<compile_context>
chip_gen: v6e
topology: v6e:2x2x1
jax: 0.10.0
libtpu: 0.0.40
codegen_flags: <defaults>
</compile_context>

<pallas_src>
import functools

import jax
import jax.numpy as jnp
from jax.experimental import pallas as pl
from jax.experimental.pallas import tpu as pltpu


# ----------------------------- helpers -------------------------------------


def _round_up(n, m):
    return ((n + m - 1) // m) * m


def _pad2(a, rows, cols):
    return jnp.pad(a, ((0, rows - a.shape[0]), (0, cols - a.shape[1])))


def _vmem_capacity_bytes():
    try:
        return int(pltpu.get_tpu_info().vmem_capacity_bytes)
    except Exception:
        return 64 * 2**20  # conservative (v7x per-TC VMEM)


def _choose_row_tile(batch, vmem_cap_bytes):
    """Adaptive row tile: bounded padding waste, >=2 grid steps when batch > 8
    (so dimension_semantics=('parallel',) actually uses both v7x TensorCores)."""
    if batch <= 8:
        return 8
    max_tile = 1024 if vmem_cap_bytes >= 96 * 2**20 else 512
    for t in (1024, 512, 256, 128, 64, 32, 16, 8):
        if t > max_tile:
            continue
        padded = _round_up(batch, t)
        waste = (padded - batch) / batch
        if padded // t >= 2 and waste <= 0.125:
            return t
    return 8


def _vmem_budget_bytes(tm, in_p, h_p, out_p, cap):
    """Explicit accounting: weights/biases single-buffered, x/out double-buffered."""
    w = 2 * (in_p * h_p + h_p * h_p + h_p * out_p)      # bf16 weights, 1 buffer
    b = 4 * 8 * (2 * h_p + out_p)                       # f32 biases (8 rows), 1 buffer
    io = 2 * (tm * in_p * 4 + tm * out_p * 4)           # x / out, 2 buffers each (worst-case f32)
    act = 4 * tm * h_p * 2 + 4 * tm * out_p             # f32 intermediates
    est = w + b + io + act
    budget = int(est * 1.25) + (4 << 20)                # compiler / spill headroom
    return int(min(max(budget, 16 << 20), int(0.78 * cap)))


# ----------------------------- kernel --------------------------------------


def mlp_kernel(x_ref, w1_ref, b1_ref, w2_ref, b2_ref, w3_ref, b3_ref, o_ref):
    # x arrives as f32 (no wrapper copy) or bf16 (padded in wrapper); MXU
    # operands are bf16, accumulation / bias add / ReLU stay f32 on the VPU.
    x = x_ref[...].astype(jnp.bfloat16)
    h1 = jnp.dot(x, w1_ref[...], preferred_element_type=jnp.float32)
    h1 = jnp.maximum(h1 + b1_ref[0:1, :], 0.0)
    h2 = jnp.dot(h1.astype(jnp.bfloat16), w2_ref[...], preferred_element_type=jnp.float32)
    h2 = jnp.maximum(h2 + b2_ref[0:1, :], 0.0)
    out = jnp.dot(h2.astype(jnp.bfloat16), w3_ref[...], preferred_element_type=jnp.float32)
    o_ref[...] = (out + b3_ref[0:1, :]).astype(o_ref.dtype)


# ----------------------------- pallas wrapper -------------------------------


@functools.partial(jax.jit, static_argnames=("d_out", "tm", "vmem_limit"))
def _forward_pallas(x, w1, b1, w2, b2, w3, b3, *, d_out, tm, vmem_limit):
    batch, d_in = x.shape
    out_dtype = x.dtype
    in_p, h_p = w1.shape
    out_p = w3.shape[1]
    b_p = _round_up(batch, tm)

    # Only copy x if padding is required; fold the bf16 cast into that copy.
    if (batch != b_p) or (d_in != in_p):
        x_in = _pad2(x, b_p, in_p).astype(jnp.bfloat16)
    else:
        x_in = x  # cast happens in-kernel (halves activation HBM traffic)

    grid = (b_p // tm,)
    const = lambda i: (0, 0)

    def wspec(shape):
        # VMEM-resident across the whole grid; single buffer (no wasted copy).
        return pl.BlockSpec(shape, const, pipeline_mode=pl.Buffered(1))

    flops = 2 * b_p * (in_p * h_p + h_p * h_p + h_p * out_p)
    bytes_accessed = (
        x_in.size * x_in.dtype.itemsize
        + sum(a.size * a.dtype.itemsize for a in (w1, b1, w2, b2, w3, b3))
        + b_p * out_p * 4
    )

    out = pl.pallas_call(
        mlp_kernel,
        out_shape=jax.ShapeDtypeStruct((b_p, out_p), out_dtype),
        grid=grid,
        in_specs=[
            pl.BlockSpec((tm, in_p), lambda i: (i, 0)),
            wspec((in_p, h_p)),
            wspec((8, h_p)),
            wspec((h_p, h_p)),
            wspec((8, h_p)),
            wspec((h_p, out_p)),
            wspec((8, out_p)),
        ],
        out_specs=pl.BlockSpec((tm, out_p), lambda i: (i, 0)),
        compiler_params=pltpu.CompilerParams(
            dimension_semantics=("parallel",),
            vmem_limit_bytes=vmem_limit,
        ),
        cost_estimate=pl.CostEstimate(
            flops=int(flops), transcendentals=0, bytes_accessed=int(bytes_accessed)
        ),
    )(x_in, w1, b1, w2, b2, w3, b3)

    return out[:batch, :d_out]


# ----------------------------- param prep ----------------------------------


def prepare_params(params):
    """One-time pad (multiples of 128) + bf16 cast of weights; f32 biases
    replicated to 8 sublanes.  Hoists this traffic out of every forward."""
    w1, b1, w2, b2, w3, b3 = params
    d_in, d_h = w1.shape
    d_out = w3.shape[1]
    in_p, h_p, out_p = (_round_up(d, 128) for d in (d_in, d_h, d_out))

    def prep_bias(b, d, p):
        return _pad2(jnp.broadcast_to(jnp.reshape(b, (1, -1)), (8, d)), 8, p).astype(jnp.float32)

    arrays = (
        _pad2(w1, in_p, h_p).astype(jnp.bfloat16),
        prep_bias(b1, d_h, h_p),
        _pad2(w2, h_p, h_p).astype(jnp.bfloat16),
        prep_bias(b2, d_h, h_p),
        _pad2(w3, h_p, out_p).astype(jnp.bfloat16),
        prep_bias(b3, d_out, out_p),
    )
    return arrays, (d_in, d_h, d_out)


_PREP_CACHE = {}


def _get_prepared(params):
    key = tuple(id(p) for p in params)
    prep = _PREP_CACHE.get(key)
    if prep is None:
        prep = prepare_params(params)
        _PREP_CACHE[key] = prep
    return prep


# ----------------------------- public forward -------------------------------


def mlp_base_ref(x, params):
    """Pure-JAX f32 reference (also the small/too-large fallback path)."""
    w1, b1, w2, b2, w3, b3 = params
    h1 = jnp.maximum(x @ w1 + jnp.reshape(b1, (1, -1)), 0.0)
    h2 = jnp.maximum(h1 @ w2 + jnp.reshape(b2, (1, -1)), 0.0)
    return h2 @ w3 + jnp.reshape(b3, (1, -1))


def mlp_base_forward(x, params, prepared=None, force_pallas=False):
    """Pallas implementation of MLPBase.forward. Returns (out, None)."""
    w1, w3 = params[0], params[4]
    d_in, d_h = w1.shape
    d_out = w3.shape[1]
    batch = x.shape[0]
    cap = _vmem_capacity_bytes()

    in_p, h_p, out_p = (_round_up(d, 128) for d in (d_in, d_h, d_out))
    weight_bytes = 2 * (in_p * h_p + h_p * h_p + h_p * out_p)

    small = max(d_in, d_h, d_out) < 128 and batch < 256
    too_big = weight_bytes > int(0.45 * cap)
    if (small and not force_pallas) or too_big:
        # TODO(synk): K-tiled / emit_pipeline streaming path for hidden dims whose
        # weights exceed VMEM residency; plain XLA fallback for now.
        return mlp_base_ref(x, params), None

    if prepared is None:
        prepared = _get_prepared(params)
    arrays, _ = prepared
    tm = _choose_row_tile(batch, cap)
    vmem_limit = _vmem_budget_bytes(tm, in_p, h_p, out_p, cap)
    out = _forward_pallas(x, *arrays, d_out=d_out, tm=tm, vmem_limit=vmem_limit)
    return out, None


# ----------------------------- init ------------------------------------------


def init_params(key, input_shape, hidden_dim, output_shape):
    """Deterministic init mimicking nn.Linear default (uniform +-1/sqrt(fan_in)).
    Weights stored as [in, out]; biases as [1, out]."""

    def linear_init(k, fan_in, fan_out):
        kw, kb = jax.random.split(k)
        bound = 1.0 / jnp.sqrt(fan_in)
        w = jax.random.uniform(kw, (fan_in, fan_out), jnp.float32, -bound, bound)
        b = jax.random.uniform(kb, (1, fan_out), jnp.float32, -bound, bound)
        return w, b

    k1, k2, k3 = jax.random.split(key, 3)
    w1, b1 = linear_init(k1, input_shape, hidden_dim)
    w2, b2 = linear_init(k2, hidden_dim, hidden_dim)
    w3, b3 = linear_init(k3, hidden_dim, output_shape)
    return (w1, b1, w2, b2, w3, b3)


# ----------------------------- main -----------------------------------------


if __name__ == "__main__":
    key = jax.random.PRNGKey(0)

    # Config 1: toy shape from the module spec (forces the Pallas path so the
    # kernel is exercised; tests feature/batch padding + single grid step).
    k1, k2, kx1, kx2 = jax.random.split(key, 4)
    params_small = init_params(k1, 16, 32, 8)
    x_small = jax.random.normal(kx1, (8, 16), jnp.float32)
    out_s, hid_s = mlp_base_forward(x_small, params_small, force_pallas=True)
    out_s = jax.block_until_ready(out_s)
    ref_s = mlp_base_ref(x_small, params_small)
    assert out_s.shape == (8, 8) and hid_s is None
    assert jnp.allclose(out_s, ref_s, atol=5e-2, rtol=5e-2), "small-config mismatch"

    # Config 2: lane-aligned dims, batch > tile -> 2 grid steps, no x padding
    # (f32 x cast in-kernel), weights VMEM-resident with Buffered(1).
    params_big = init_params(k2, 128, 256, 128)
    x_big = jax.random.normal(kx2, (256, 128), jnp.float32)
    prepared = prepare_params(params_big)   # hoisted one-time pad/cast
    out_b, hid_b = mlp_base_forward(x_big, params_big, prepared=prepared)
    out_b = jax.block_until_ready(out_b)
    ref_b = mlp_base_ref(x_big, params_big)
    assert out_b.shape == (256, 128) and hid_b is None
    assert jnp.allclose(out_b, ref_b, atol=5e-2, rtol=5e-2), "aligned-config mismatch"

    print("KERNEL_OK")
</pallas_src>

<mosaic_0001>
module attributes {stable_mosaic.version = 11 : i64} {
  func.func @mlp_kernel(%arg0: i32, %arg1: memref<8x128xbf16, #tpu.memory_space<vmem>>, %arg2: memref<128x128xbf16, #tpu.memory_space<vmem>>, %arg3: memref<8x128xf32, #tpu.memory_space<vmem>>, %arg4: memref<128x128xbf16, #tpu.memory_space<vmem>>, %arg5: memref<8x128xf32, #tpu.memory_space<vmem>>, %arg6: memref<128x128xbf16, #tpu.memory_space<vmem>>, %arg7: memref<8x128xf32, #tpu.memory_space<vmem>>, %arg8: memref<8x128xf32, #tpu.memory_space<vmem>>) attributes {dimension_semantics = [#tpu.dimension_semantics<parallel>], iteration_bounds = array<i64: 1>, scalar_prefetch = 0 : i64, scratch_operands = 0 : i64, tpu.core_type = #tpu.core_type<tc>, window_params = [{transform_indices = @transform_0, window_bounds = array<i64: 8, 128>}, {pipeline_mode = #tpu.pipeline_mode<synchronous>, transform_indices = @transform_1, window_bounds = array<i64: 128, 128>}, {pipeline_mode = #tpu.pipeline_mode<synchronous>, transform_indices = @transform_2, window_bounds = array<i64: 8, 128>}, {pipeline_mode = #tpu.pipeline_mode<synchronous>, transform_indices = @transform_3, window_bounds = array<i64: 128, 128>}, {pipeline_mode = #tpu.pipeline_mode<synchronous>, transform_indices = @transform_4, window_bounds = array<i64: 8, 128>}, {pipeline_mode = #tpu.pipeline_mode<synchronous>, transform_indices = @transform_5, window_bounds = array<i64: 128, 128>}, {pipeline_mode = #tpu.pipeline_mode<synchronous>, transform_indices = @transform_6, window_bounds = array<i64: 8, 128>}, {transform_indices = @transform_7, window_bounds = array<i64: 8, 128>}]} {
    %c0 = arith.constant 0 : index
    %c0_0 = arith.constant 0 : index
    %0 = vector.load %arg1[%c0, %c0_0] : memref<8x128xbf16, #tpu.memory_space<vmem>>, vector<8x128xbf16>
    %c0_1 = arith.constant 0 : index
    %c0_2 = arith.constant 0 : index
    %1 = vector.load %arg2[%c0_1, %c0_2] : memref<128x128xbf16, #tpu.memory_space<vmem>>, vector<128x128xbf16>
    %cst = arith.constant dense<0.000000e+00> : vector<8x128xf32>
    %2 = tpu.matmul %0, %1, %cst {dimension_numbers = #tpu.dot_dimension_numbers<[1], [0], [0], [1], [0, 0, 1, 1], [], []>} : vector<8x128xbf16>, vector<128x128xbf16>, vector<8x128xf32> -> vector<8x128xf32>
    %c0_3 = arith.constant 0 : index
    %c0_4 = arith.constant 0 : index
    %3 = vector.load %arg3[%c0_3, %c0_4] : memref<8x128xf32, #tpu.memory_space<vmem>>, vector<1x128xf32>
    %4 = vector.broadcast %3 : vector<1x128xf32> to vector<8x128xf32>
    %5 = arith.addf %2, %4 : vector<8x128xf32>
    %cst_5 = arith.constant 0.000000e+00 : f32
    %6 = vector.broadcast %cst_5 : f32 to vector<8x128xf32>
    %7 = arith.maximumf %5, %6 : vector<8x128xf32>
    %8 = arith.truncf %7 : vector<8x128xf32> to vector<8x128xbf16>
    %c0_6 = arith.constant 0 : index
    %c0_7 = arith.constant 0 : index
    %9 = vector.load %arg4[%c0_6, %c0_7] : memref<128x128xbf16, #tpu.memory_space<vmem>>, vector<128x128xbf16>
    %cst_8 = arith.constant dense<0.000000e+00> : vector<8x128xf32>
    %10 = tpu.matmul %8, %9, %cst_8 {dimension_numbers = #tpu.dot_dimension_numbers<[1], [0], [0], [1], [0, 0, 1, 1], [], []>} : vector<8x128xbf16>, vector<128x128xbf16>, vector<8x128xf32> -> vector<8x128xf32>
    %c0_9 = arith.constant 0 : index
    %c0_10 = arith.constant 0 : index
    %11 = vector.load %arg5[%c0_9, %c0_10] : memref<8x128xf32, #tpu.memory_space<vmem>>, vector<1x128xf32>
    %12 = vector.broadcast %11 : vector<1x128xf32> to vector<8x128xf32>
    %13 = arith.addf %10, %12 : vector<8x128xf32>
    %cst_11 = arith.constant 0.000000e+00 : f32
    %14 = vector.broadcast %cst_11 : f32 to vector<8x128xf32>
    %15 = arith.maximumf %13, %14 : vector<8x128xf32>
    %16 = arith.truncf %15 : vector<8x128xf32> to vector<8x128xbf16>
    %c0_12 = arith.constant 0 : index
    %c0_13 = arith.constant 0 : index
    %17 = vector.load %arg6[%c0_12, %c0_13] : memref<128x128xbf16, #tpu.memory_space<vmem>>, vector<128x128xbf16>
    %cst_14 = arith.constant dense<0.000000e+00> : vector<8x128xf32>
    %18 = tpu.matmul %16, %17, %cst_14 {dimension_numbers = #tpu.dot_dimension_numbers<[1], [0], [0], [1], [0, 0, 1, 1], [], []>} : vector<8x128xbf16>, vector<128x128xbf16>, vector<8x128xf32> -> vector<8x128xf32>
    %c0_15 = arith.constant 0 : index
    %c0_16 = arith.constant 0 : index
    %19 = vector.load %arg7[%c0_15, %c0_16] : memref<8x128xf32, #tpu.memory_space<vmem>>, vector<1x128xf32>
    %20 = vector.broadcast %19 : vector<1x128xf32> to vector<8x128xf32>
    %21 = arith.addf %18, %20 : vector<8x128xf32>
    %c0_17 = arith.constant 0 : index
    %c0_18 = arith.constant 0 : index
    %22 = vector.load %arg8[%c0_17, %c0_18] : memref<8x128xf32, #tpu.memory_space<vmem>>, vector<8x128xf32>
    tpu.vector_store %arg8[%c0_17, %c0_18], %21 {strides = array<i32>} : memref<8x128xf32, #tpu.memory_space<vmem>>, vector<8x128xf32>,
    return
  }
  func.func @transform_0(%arg0: i32) -> (i32, i32) {
    %c0_i32 = arith.constant 0 : i32
    %c0_i32_0 = arith.constant 0 : i32
    return %arg0, %c0_i32 : i32, i32
  }
  func.func @transform_1(%arg0: i32) -> (i32, i32) {
    %c0_i32 = arith.constant 0 : i32
    %c0_i32_0 = arith.constant 0 : i32
    %c0_i32_1 = arith.constant 0 : i32
    return %c0_i32, %c0_i32_0 : i32, i32
  }
  func.func @transform_2(%arg0: i32) -> (i32, i32) {
    %c0_i32 = arith.constant 0 : i32
    %c0_i32_0 = arith.constant 0 : i32
    %c0_i32_1 = arith.constant 0 : i32
    return %c0_i32, %c0_i32_0 : i32, i32
  }
  func.func @transform_3(%arg0: i32) -> (i32, i32) {
    %c0_i32 = arith.constant 0 : i32
    %c0_i32_0 = arith.constant 0 : i32
    %c0_i32_1 = arith.constant 0 : i32
    return %c0_i32, %c0_i32_0 : i32, i32
  }
  func.func @transform_4(%arg0: i32) -> (i32, i32) {
    %c0_i32 = arith.constant 0 : i32
    %c0_i32_0 = arith.constant 0 : i32
    %c0_i32_1 = arith.constant 0 : i32
    return %c0_i32, %c0_i32_0 : i32, i32
  }
  func.func @transform_5(%arg0: i32) -> (i32, i32) {
    %c0_i32 = arith.constant 0 : i32
    %c0_i32_0 = arith.constant 0 : i32
    %c0_i32_1 = arith.constant 0 : i32
    return %c0_i32, %c0_i32_0 : i32, i32
  }
  func.func @transform_6(%arg0: i32) -> (i32, i32) {
    %c0_i32 = arith.constant 0 : i32
    %c0_i32_0 = arith.constant 0 : i32
    %c0_i32_1 = arith.constant 0 : i32
    return %c0_i32, %c0_i32_0 : i32, i32
  }
  func.func @transform_7(%arg0: i32) -> (i32, i32) {
    %c0_i32 = arith.constant 0 : i32
    %c0_i32_0 = arith.constant 0 : i32
    return %arg0, %c0_i32 : i32, i32
  }
}

</mosaic_0001>

<llo_original>
// kernel: _forward_pallas.1
$region0: #{_forward_pallas.1}
  #allocation0 [shape = 'u32[]', space=smem, size = 0x4, offset = 0x4, fixed_abs, tag = 'smem constant byte address 0x4 - core index']
  #allocation1 [shape = 'u32[144,128]{1,0:T(1,128)}', space=vmem, size = 0x12000, scoped, tag = 'internal scratch']
  %s0 = inlined_call_operand.vmem [shape: bf16[8,128], index: 0, kind: input, shape index: {}]
  %s1 = inlined_call_operand.hbm [shape: bf16[128,128], index: 1, kind: input, shape index: {}]
  %s2 = inlined_call_operand.vmem [shape: f32[8,128], index: 2, kind: input, shape index: {}]
  %s3 = inlined_call_operand.hbm [shape: bf16[128,128], index: 3, kind: input, shape index: {}]
  %s4 = inlined_call_operand.vmem [shape: f32[8,128], index: 4, kind: input, shape index: {}]
  %s5 = inlined_call_operand.hbm [shape: bf16[128,128], index: 5, kind: input, shape index: {}]
  %s6 = inlined_call_operand.vmem [shape: f32[8,128], index: 6, kind: input, shape index: {}]
  %s7 = inlined_call_operand.hbm [shape: f32[8,128], index: 7, kind: output, shape index: {}]
  %s8 = sld [smem:[#allocation0]]
  $region50: #{_forward_pallas.1} parent=0
    _
  %s10 = ssub.s32 1, %s8
  %s11 = scalar_select 0, %s10, %s8
  $region1: #{_forward_pallas.1} parent=0
    #allocation2 [shape = 'u8[32768]{0}', space=vmem, size = 0x8000, scoped, tag = 'input window, operand 1, single buffered']
    #allocation3 [shape = 's32[1]{0}', space=sflag, size = 0x4, scoped, tag = 'scoped memory for _forward_pallas.1']
    #allocation4 [shape = 's32[1]{0}', space=sflag, size = 0x4, scoped, tag = 'scoped memory for _forward_pallas.1']
    #allocation5 [shape = 'u8[32768]{0}', space=vmem, size = 0x8000, scoped, tag = 'input window, operand 3, single buffered']
    #allocation6 [shape = 's32[1]{0}', space=sflag, size = 0x4, scoped, tag = 'scoped memory for _forward_pallas.1']
    #allocation7 [shape = 'u8[32768]{0}', space=vmem, size = 0x8000, scoped, tag = 'input window, operand 5, single buffered']
    #allocation8 [shape = 'u8[4096]{0}', space=vmem, size = 0x1000, scoped, tag = 'output window, operand 0, single buffered']
    %12 = vsyncpa [#allocation3], 0
    %13 = vsyncpa [#allocation6], 0
    %14 = vsyncpa [#allocation4], 0
    // Predicated region
    $region2: #{_forward_pallas.1} parent=1 // pred_check
      _
    $region3: #{_forward_pallas.1} parent=1 // pred_check_branch
      %16 = sbr.rel (0) target = $region5
    $region4: #{_forward_pallas.1} parent=1 // pred_region
      _
    $region5: #{_forward_pallas.1} parent=1 // pred_fallthru
      _
    // Predicated region
    $region6: #{_forward_pallas.1} parent=1 // pred_check
      _
    $region7: #{_forward_pallas.1} parent=1 // pred_check_branch
      %18 = sbr.rel (0) target = $region9
    $region8: #{_forward_pallas.1} parent=1 // pred_region
      %s20 = ssub.s32 1024, 1024
      %21 = vsyncadd [#allocation3], %s20
      %s22 = sshll.u32 [#allocation2], 4
      %s23 = int_to_ptr.vmem [resolvable:$true] %s22
      %28 = dma.hbm_to_vmem [thread:$0]  %s1, 1024, %s23, [#allocation3], 64, 64, 4
    $region9: #{_forward_pallas.1} parent=1 // pred_fallthru
      _
    // Predicated region
    $region10: #{_forward_pallas.1} parent=1 // pred_check
      _
    $region11: #{_forward_pallas.1} parent=1 // pred_check_branch
      %30 = sbr.rel (0) target = $region13
    $region12: #{_forward_pallas.1} parent=1 // pred_region
      _
    $region13: #{_forward_pallas.1} parent=1 // pred_fallthru
      _
    // Predicated region
    $region14: #{_forward_pallas.1} parent=1 // pred_check
      _
    $region15: #{_forward_pallas.1} parent=1 // pred_check_branch
      %32 = sbr.rel (0) target = $region17
    $region16: #{_forward_pallas.1} parent=1 // pred_region
      %s34 = ssub.s32 1024, 1024
      %35 = vsyncadd [#allocation6], %s34
      %s36 = sshll.u32 [#allocation5], 4
      %s37 = int_to_ptr.vmem [resolvable:$true] %s36
      %42 = dma.hbm_to_vmem [thread:$0]  %s3, 1024, %s37, [#allocation6], 64, 64, 4
    $region17: #{_forward_pallas.1} parent=1 // pred_fallthru
      _
    // Predicated region
    $region18: #{_forward_pallas.1} parent=1 // pred_check
      _
    $region19: #{_forward_pallas.1} parent=1 // pred_check_branch
      %44 = sbr.rel (0) target = $region21
    $region20: #{_forward_pallas.1} parent=1 // pred_region
      _
    $region21: #{_forward_pallas.1} parent=1 // pred_fallthru
      _
    // Predicated region
    $region22: #{_forward_pallas.1} parent=1 // pred_check
      _
    $region23: #{_forward_pallas.1} parent=1 // pred_check_branch
      %46 = sbr.rel (0) target = $region25
    $region24: #{_forward_pallas.1} parent=1 // pred_region
      %s48 = ssub.s32 1024, 1024
      %49 = vsyncadd [#allocation6], %s48
      %s50 = sshll.u32 [#allocation7], 4
      %s51 = int_to_ptr.vmem [resolvable:$true] %s50
      %56 = dma.hbm_to_vmem [thread:$0]  %s5, 1024, %s51, [#allocation6], 64, 64, 4
    $region25: #{_forward_pallas.1} parent=1 // pred_fallthru
      _
    // Predicated region
    $region26: #{_forward_pallas.1} parent=1 // pred_check
      _
    $region27: #{_forward_pallas.1} parent=1 // pred_check_branch
      %58 = sbr.rel (0) target = $region29
    $region28: #{_forward_pallas.1} parent=1 // pred_region
      _
    $region29: #{_forward_pallas.1} parent=1 // pred_fallthru
      _
    // Predicated region
    $region30: #{_forward_pallas.1} parent=1 // pred_check
      _
    $region31: #{_forward_pallas.1} parent=1 // pred_check_branch
      %60 = sbr.rel (0) target = $region33
    $region32: #{_forward_pallas.1} parent=1 // pred_region
      %61 = dma.done [#allocation3], 1024
    $region33: #{_forward_pallas.1} parent=1 // pred_fallthru
      _
    // Predicated region
    $region34: #{_forward_pallas.1} parent=1 // pred_check
      _
    $region35: #{_forward_pallas.1} parent=1 // pred_check_branch
      %63 = sbr.rel (0) target = $region37
    $region36: #{_forward_pallas.1} parent=1 // pred_region
      %64 = dma.done [#allocation6], 1024
    $region37: #{_forward_pallas.1} parent=1 // pred_fallthru
      _
    // Predicated region
    $region38: #{_forward_pallas.1} parent=1 // pred_check
      _
    $region39: #{_forward_pallas.1} parent=1 // pred_check_branch
      %66 = sbr.rel (0) target = $region41
    $region40: #{_forward_pallas.1} parent=1 // pred_region
      %67 = dma.done [#allocation6], 1024
    $region41: #{_forward_pallas.1} parent=1 // pred_fallthru
      _
    %v69 = vld [vmem:[%s0] sm:$0xf]
    %v70 = vld [vmem:[#allocation2] sm:$0xf]
    %v71 = vld [vmem:[#allocation2 + $0x4] sm:$0xf]
    %v72 = vld [vmem:[#allocation2 + $0x8] sm:$0xf]
    %v73 = vld [vmem:[#allocation2 + $0xc] sm:$0xf]
    %v74 = vld [vmem:[#allocation2 + $0x10] sm:$0xf]
    %v75 = vld [vmem:[#allocation2 + $0x14] sm:$0xf]
    %v76 = vld [vmem:[#allocation2 + $0x18] sm:$0xf]
    %v77 = vld [vmem:[#allocation2 + $0x1c] sm:$0xf]
    %v78 = vld [vmem:[#allocation2 + $0x20] sm:$0xf]
    %v79 = vld [vmem:[#allocation2 + $0x24] sm:$0xf]
    %v80 = vld [vmem:[#allocation2 + $0x28] sm:$0xf]
    %v81 = vld [vmem:[#allocation2 + $0x2c] sm:$0xf]
    %v82 = vld [vmem:[#allocation2 + $0x30] sm:$0xf]
    %v83 = vld [vmem:[#allocation2 + $0x34] sm:$0xf]
    %v84 = vld [vmem:[#allocation2 + $0x38] sm:$0xf]
    %v85 = vld [vmem:[#allocation2 + $0x3c] sm:$0xf]
    %v86 = vld [vmem:[%s2] sm:$0x1]
    %v87 = vlaneseq
    %v88 = vshrl.u32 %v87, 7
    %v89 = vsub.s32 0, %v88
    %v90 = vrot.slane %v86, %v89
    %v107 = vunpack.c.l.b16 %v70
    %v108 = vunpack.c.l.b16 %v71
    %v109 = vunpack.c.l.b16 %v72
    %v110 = vunpack.c.l.b16 %v73
    %v111 = vunpack.c.l.b16 %v74
    %v112 = vunpack.c.l.b16 %v75
    %v113 = vunpack.c.l.b16 %v76
    %v114 = vunpack.c.l.b16 %v77
    %v115 = vunpack.c.l.b16 %v78
    %v116 = vunpack.c.l.b16 %v79
    %v117 = vunpack.c.l.b16 %v80
    %v118 = vunpack.c.l.b16 %v81
    %v119 = vunpack.c.l.b16 %v82
    %v120 = vunpack.c.l.b16 %v83
    %v121 = vunpack.c.l.b16 %v84
    %v122 = vunpack.c.l.b16 %v85
    %v123 = vpack.c.b16 %v108, %v107
    %v124 = vpack.c.b16 %v110, %v109
    %v125 = vpack.c.b16 %v112, %v111
    %v126 = vpack.c.b16 %v114, %v113
    %v127 = vpack.c.b16 %v116, %v115
    %v128 = vpack.c.b16 %v118, %v117
    %v129 = vpack.c.b16 %v120, %v119
    %v130 = vpack.c.b16 %v122, %v121
    %139 = vmatprep.subr.bf16.mxu0 0
    %140 = vmatpush1.bf16.msra.mxu0 %v130
    %141 = vmatprep.subr.bf16.mxu0 0
    %142 = vmatpush1.bf16.msra.mxu0 %v129
    %143 = vmatprep.subr.bf16.mxu0 0
    %144 = vmatpush1.bf16.msra.mxu0 %v128
    %145 = vmatprep.subr.bf16.mxu0 0
    %146 = vmatpush1.bf16.msra.mxu0 %v127
    %147 = vmatprep.subr.bf16.mxu0 0
    %148 = vmatpush1.bf16.msra.mxu0 %v126
    %149 = vmatprep.subr.bf16.mxu0 0
    %150 = vmatpush1.bf16.msra.mxu0 %v125
    %151 = vmatprep.subr.bf16.mxu0 0
    %152 = vmatpush1.bf16.msra.mxu0 %v124
    %153 = vmatprep.subr.bf16.mxu0 0
    %154 = vmatpush1.bf16.msra.mxu0 %v123
    %155 = vmatprep.subr.bf16.mxu0 0
    %156 = vmatpush2.bf16.msra.mxu0 0
    %157 = vmatprep.subr.bf16.mxu0 0
    %158 = vmatpush2.bf16.msra.mxu0 0
    %159 = vmatprep.subr.bf16.mxu0 0
    %160 = vmatpush2.bf16.msra.mxu0 0
    %161 = vmatprep.subr.bf16.mxu0 0
    %162 = vmatpush2.bf16.msra.mxu0 0
    %163 = vmatprep.subr.bf16.mxu0 0
    %164 = vmatpush2.bf16.msra.mxu0 0
    %165 = vmatprep.subr.bf16.mxu0 0
    %166 = vmatpush2.bf16.msra.mxu0 0
    %167 = vmatprep.subr.bf16.mxu0 0
    %168 = vmatpush2.bf16.msra.mxu0 0
    %169 = vmatprep.subr.bf16.mxu0 0
    %170 = vmatpush2.bf16.msra.mxu0 0
    %171 = vmatprep.mubr.bf16.mxu0 0
    %172 = vmatmul.mubr.bf16.gmra.mxu0 %v69
    %v173 = vpop.f32.mrf.mxu0
    %v174 = vadd.f32 %v90, %v173
    %v175 = vpop.f32.mrf.mxu0
    %v176 = vpop.f32.mrf.mxu0
    %v177 = vpop.f32.mrf.mxu0
    %178 = vdwg.mxu0
    %v179 = vmax.f32 %v174, 0.0
    %v180 = vpack.c.bf16 %v179, %v179
    %v181 = vld [vmem:[#allocation5] sm:$0xf]
    %v182 = vld [vmem:[#allocation5 + $0x4] sm:$0xf]
    %v183 = vld [vmem:[#allocation5 + $0x8] sm:$0xf]
    %v184 = vld [vmem:[#allocation5 + $0xc] sm:$0xf]
    %v185 = vld [vmem:[#allocation5 + $0x10] sm:$0xf]
    %v186 = vld [vmem:[#allocation5 + $0x14] sm:$0xf]
    %v187 = vld [vmem:[#allocation5 + $0x18] sm:$0xf]
    %v188 = vld [vmem:[#allocation5 + $0x1c] sm:$0xf]
    %v189 = vld [vmem:[#allocation5 + $0x20] sm:$0xf]
    %v190 = vld [vmem:[#allocation5 + $0x24] sm:$0xf]
    %v191 = vld [vmem:[#allocation5 + $0x28] sm:$0xf]
    %v192 = vld [vmem:[#allocation5 + $0x2c] sm:$0xf]
    %v193 = vld [vmem:[#allocation5 + $0x30] sm:$0xf]
    %v194 = vld [vmem:[#allocation5 + $0x34] sm:$0xf]
    %v195 = vld [vmem:[#allocation5 + $0x38] sm:$0xf]
    %v196 = vld [vmem:[#allocation5 + $0x3c] sm:$0xf]
    %v197 = vld [vmem:[%s4] sm:$0x1]
    %v198 = vlaneseq
    %v199 = vshrl.u32 %v198, 7
    %v200 = vsub.s32 0, %v199
    %v201 = vrot.slane %v197, %v200
    %v218 = vunpack.c.l.b16 %v181
    %v219 = vunpack.c.l.b16 %v182
    %v220 = vunpack.c.l.b16 %v183
    %v221 = vunpack.c.l.b16 %v184
    %v222 = vunpack.c.l.b16 %v185
    %v223 = vunpack.c.l.b16 %v186
    %v224 = vunpack.c.l.b16 %v187
    %v225 = vunpack.c.l.b16 %v188
    %v226 = vunpack.c.l.b16 %v189
    %v227 = vunpack.c.l.b16 %v190
    %v228 = vunpack.c.l.b16 %v191
    %v229 = vunpack.c.l.b16 %v192
    %v230 = vunpack.c.l.b16 %v193
    %v231 = vunpack.c.l.b16 %v194
    %v232 = vunpack.c.l.b16 %v195
    %v233 = vunpack.c.l.b16 %v196
    %v234 = vpack.c.b16 %v219, %v218
    %v235 = vpack.c.b16 %v221, %v220
    %v236 = vpack.c.b16 %v223, %v222
    %v237 = vpack.c.b16 %v225, %v224
    %v238 = vpack.c.b16 %v227, %v226
    %v239 = vpack.c.b16 %v229, %v228
    %v240 = vpack.c.b16 %v231, %v230
    %v241 = vpack.c.b16 %v233, %v232
    %250 = vmatprep.subr.bf16.mxu0 0
    %251 = vmatpush1.bf16.msra.mxu0 %v241
    %252 = vmatprep.subr.bf16.mxu0 0
    %253 = vmatpush1.bf16.msra.mxu0 %v240
    %254 = vmatprep.subr.bf16.mxu0 0
    %255 = vmatpush1.bf16.msra.mxu0 %v239
    %256 = vmatprep.subr.bf16.mxu0 0
    %257 = vmatpush1.bf16.msra.mxu0 %v238
    %258 = vmatprep.subr.bf16.mxu0 0
    %259 = vmatpush1.bf16.msra.mxu0 %v237
    %260 = vmatprep.subr.bf16.mxu0 0
    %261 = vmatpush1.bf16.msra.mxu0 %v236
    %262 = vmatprep.subr.bf16.mxu0 0
    %263 = vmatpush1.bf16.msra.mxu0 %v235
    %264 = vmatprep.subr.bf16.mxu0 0
    %265 = vmatpush1.bf16.msra.mxu0 %v234
    %266 = vmatprep.subr.bf16.mxu0 0
    %267 = vmatpush2.bf16.msra.mxu0 0
    %268 = vmatprep.subr.bf16.mxu0 0
    %269 = vmatpush2.bf16.msra.mxu0 0
    %270 = vmatprep.subr.bf16.mxu0 0
    %271 = vmatpush2.bf16.msra.mxu0 0
    %272 = vmatprep.subr.bf16.mxu0 0
    %273 = vmatpush2.bf16.msra.mxu0 0
    %274 = vmatprep.subr.bf16.mxu0 0
    %275 = vmatpush2.bf16.msra.mxu0 0
    %276 = vmatprep.subr.bf16.mxu0 0
    %277 = vmatpush2.bf16.msra.mxu0 0
    %278 = vmatprep.subr.bf16.mxu0 0
    %279 = vmatpush2.bf16.msra.mxu0 0
    %280 = vmatprep.subr.bf16.mxu0 0
    %281 = vmatpush2.bf16.msra.mxu0 0
    %282 = vmatprep.mubr.bf16.mxu0 0
    %283 = vmatmul.mubr.bf16.gmra.mxu0 %v180
    %v284 = vpop.f32.mrf.mxu0
    %v285 = vadd.f32 %v201, %v284
    %v286 = vpop.f32.mrf.mxu0
    %v287 = vpop.f32.mrf.mxu0
    %v288 = vpop.f32.mrf.mxu0
    %289 = vdwg.mxu0
    %v290 = vmax.f32 %v285, 0.0
    %v291 = vpack.c.bf16 %v290, %v290
    %v292 = vld [vmem:[#allocation7] sm:$0xf]
    %v293 = vld [vmem:[#allocation7 + $0x4] sm:$0xf]
    %v294 = vld [vmem:[#allocation7 + $0x8] sm:$0xf]
    %v295 = vld [vmem:[#allocation7 + $0xc] sm:$0xf]
    %v296 = vld [vmem:[#allocation7 + $0x10] sm:$0xf]
    %v297 = vld [vmem:[#allocation7 + $0x14] sm:$0xf]
    %v298 = vld [vmem:[#allocation7 + $0x18] sm:$0xf]
    %v299 = vld [vmem:[#allocation7 + $0x1c] sm:$0xf]
    %v300 = vld [vmem:[#allocation7 + $0x20] sm:$0xf]
    %v301 = vld [vmem:[#allocation7 + $0x24] sm:$0xf]
    %v302 = vld [vmem:[#allocation7 + $0x28] sm:$0xf]
    %v303 = vld [vmem:[#allocation7 + $0x2c] sm:$0xf]
    %v304 = vld [vmem:[#allocation7 + $0x30] sm:$0xf]
    %v305 = vld [vmem:[#allocation7 + $0x34] sm:$0xf]
    %v306 = vld [vmem:[#allocation7 + $0x38] sm:$0xf]
    %v307 = vld [vmem:[#allocation7 + $0x3c] sm:$0xf]
    %v308 = vld [vmem:[%s6] sm:$0x1]
    %v309 = vlaneseq
    %v310 = vshrl.u32 %v309, 7
    %v311 = vsub.s32 0, %v310
    %v312 = vrot.slane %v308, %v311
    %v329 = vunpack.c.l.b16 %v292
    %v330 = vunpack.c.l.b16 %v293
    %v331 = vunpack.c.l.b16 %v294
    %v332 = vunpack.c.l.b16 %v295
    %v333 = vunpack.c.l.b16 %v296
    %v334 = vunpack.c.l.b16 %v297
    %v335 = vunpack.c.l.b16 %v298
    %v336 = vunpack.c.l.b16 %v299
    %v337 = vunpack.c.l.b16 %v300
    %v338 = vunpack.c.l.b16 %v301
    %v339 = vunpack.c.l.b16 %v302
    %v340 = vunpack.c.l.b16 %v303
    %v341 = vunpack.c.l.b16 %v304
    %v342 = vunpack.c.l.b16 %v305
    %v343 = vunpack.c.l.b16 %v306
    %v344 = vunpack.c.l.b16 %v307
    %v345 = vpack.c.b16 %v330, %v329
    %v346 = vpack.c.b16 %v332, %v331
    %v347 = vpack.c.b16 %v334, %v333
    %v348 = vpack.c.b16 %v336, %v335
    %v349 = vpack.c.b16 %v338, %v337
    %v350 = vpack.c.b16 %v340, %v339
    %v351 = vpack.c.b16 %v342, %v341
    %v352 = vpack.c.b16 %v344, %v343
    %361 = vmatprep.subr.bf16.mxu0 0
    %362 = vmatpush1.bf16.msra.mxu0 %v352
    %363 = vmatprep.subr.bf16.mxu0 0
    %364 = vmatpush1.bf16.msra.mxu0 %v351
    %365 = vmatprep.subr.bf16.mxu0 0
    %366 = vmatpush1.bf16.msra.mxu0 %v350
    %367 = vmatprep.subr.bf16.mxu0 0
    %368 = vmatpush1.bf16.msra.mxu0 %v349
    %369 = vmatprep.subr.bf16.mxu0 0
    %370 = vmatpush1.bf16.msra.mxu0 %v348
    %371 = vmatprep.subr.bf16.mxu0 0
    %372 = vmatpush1.bf16.msra.mxu0 %v347
    %373 = vmatprep.subr.bf16.mxu0 0
    %374 = vmatpush1.bf16.msra.mxu0 %v346
    %375 = vmatprep.subr.bf16.mxu0 0
    %376 = vmatpush1.bf16.msra.mxu0 %v345
    %377 = vmatprep.subr.bf16.mxu0 0
    %378 = vmatpush2.bf16.msra.mxu0 0
    %379 = vmatprep.subr.bf16.mxu0 0
    %380 = vmatpush2.bf16.msra.mxu0 0
    %381 = vmatprep.subr.bf16.mxu0 0
    %382 = vmatpush2.bf16.msra.mxu0 0
    %383 = vmatprep.subr.bf16.mxu0 0
    %384 = vmatpush2.bf16.msra.mxu0 0
    %385 = vmatprep.subr.bf16.mxu0 0
    %386 = vmatpush2.bf16.msra.mxu0 0
    %387 = vmatprep.subr.bf16.mxu0 0
    %388 = vmatpush2.bf16.msra.mxu0 0
    %389 = vmatprep.subr.bf16.mxu0 0
    %390 = vmatpush2.bf16.msra.mxu0 0
    %391 = vmatprep.subr.bf16.mxu0 0
    %392 = vmatpush2.bf16.msra.mxu0 0
    %393 = vmatprep.mubr.bf16.mxu0 0
    %394 = vmatmul.mubr.bf16.gmra.mxu0 %v291
    %v395 = vpop.f32.mrf.mxu0
    %v396 = vadd.f32 %v312, %v395
    %v397 = vpop.f32.mrf.mxu0
    %v398 = vpop.f32.mrf.mxu0
    %v399 = vpop.f32.mrf.mxu0
    %400 = vdwg.mxu0
    %401 = vst [vmem:[#allocation8] sm:$0xff] %v396
    // Predicated region
    $region42: #{_forward_pallas.1} parent=1 // pred_check
      _
    $region43: #{_forward_pallas.1} parent=1 // pred_check_branch
      %403 = sbr.rel (0) target = $region45
    $region44: #{_forward_pallas.1} parent=1 // pred_region
      %s405 = ssub.s32 128, 128
      %406 = vsyncadd [#allocation4], %s405
      %s408 = sshll.u32 [#allocation8], 4
      %s409 = int_to_ptr.vmem [resolvable:$true] %s408
      %411 = dma.vmem_to_hbm [thread:$0]  %s409, 128, %s7, [#allocation4]
    $region45: #{_forward_pallas.1} parent=1 // pred_fallthru
      _
    // Predicated region
    $region46: #{_forward_pallas.1} parent=1 // pred_check
      _
    $region47: #{_forward_pallas.1} parent=1 // pred_check_branch
      %413 = sbr.rel (0) target = $region49
    $region48: #{_forward_pallas.1} parent=1 // pred_region
      %414 = dma.done [#allocation4], 128
    $region49: #{_forward_pallas.1} parent=1 // pred_fallthru
      _
    %415 = vsyncpa [#allocation3], 1
    %416 = vsyncpa [#allocation6], 1
    %417 = vsyncpa [#allocation4], 1

</llo_original>
